<compile_context>
chip_gen: v6e
topology: v6e:2x2x1
jax: 0.10.0
libtpu: 0.0.40
codegen_flags: <defaults>
</compile_context>

<pallas_src>
import math
import functools

import jax
import jax.numpy as jnp
import numpy as np
from jax.experimental import pallas as pl
from jax.experimental.pallas import tpu as pltpu


# ----------------------------------------------------------------------------
# Pallas kernel: LSTMCell recurrence with densely packed gates (single
# grid-less invocation, everything resident in VMEM).
# ----------------------------------------------------------------------------
def _process_kernel(m_ref, wih_t_ref, whh_t_ref, b_ref, i0_ref, h0_ref, c0_ref,
                    r_out_ref, c_out_ref, *, lstm_steps):
    B = m_ref.shape[0]
    H = whh_t_ref.shape[0]          # hidden dim (unpadded contraction dim)
    G = whh_t_ref.shape[1]          # 4 * H packed gate width (= 128 lanes)

    wih_t = wih_t_ref[...]          # (D, 4H)  gates packed [i | f | g | o]
    whh_t = whh_t_ref[...]          # (H, 4H)
    b = b_ref[...]                  # (1, 4H)  bias_ih + bias_hh

    # Loop-invariant attention readout: softmax over a size-1 axis == 1, so
    # r_t == sum_l M[:, :, l].  Computed once, in-kernel (no extra launches).
    r_sum = jnp.sum(m_ref[...], axis=-1)                           # (B, H)

    # Hoisted input-side gate contributions (one per distinct LSTM input);
    # bias broadcast happens only here, never inside the step loop.
    gx0 = jnp.dot(i0_ref[...], wih_t,
                  preferred_element_type=jnp.float32) + b          # (1, 4H)
    if lstm_steps > 1:
        gxr = jnp.dot(r_sum, wih_t,
                      preferred_element_type=jnp.float32) + b      # (B, 4H)
    else:
        gxr = gx0

    # Lane masks over the packed gate axis (built once, outside the loop).
    lane = jax.lax.broadcasted_iota(jnp.int32, (B, G), 1)
    g_mask = (lane >= 2 * H) & (lane < 3 * H)                      # tanh block
    f_mask = (lane >= H) & (lane < 2 * H)
    o_mask = lane >= 3 * H

    h = jnp.broadcast_to(h0_ref[...], (B, H))
    c = jnp.broadcast_to(c0_ref[...], (B, H))

    # lstm_steps is a small static constant -> unrolled Python loop.
    for t in range(lstm_steps):
        gx = gx0 if t == 0 else gxr
        # ONE MXU pass per step (K = H = 32); gate order [i, f, g, o]
        # matches torch.nn.LSTMCell.
        gates = jnp.dot(h, whh_t, preferred_element_type=jnp.float32) + gx
        # Nonlinearities in the packed layout: tanh on the g block only.
        act = jnp.where(g_mask, jnp.tanh(gates), jax.nn.sigmoid(gates))
        # Re-align f / g / o with the i block (lanes [0, H)) on the XLU.
        # 64-lane rolls are self-inverse mod 128 and the 32-lane rolls act on
        # 64-periodic data, so the recipe is rotate-direction agnostic.
        g_al = pltpu.roll(act, shift=2 * H, axis=1)             # g -> [0, H)
        f_iso = jnp.where(f_mask, act, 0.0)
        f_sp = f_iso + pltpu.roll(f_iso, shift=2 * H, axis=1)   # f in both odd blocks
        f_al = pltpu.roll(f_sp, shift=H, axis=1)                # f -> even blocks
        o_iso = jnp.where(o_mask, act, 0.0)
        o_sp = o_iso + pltpu.roll(o_iso, shift=2 * H, axis=1)
        o_al = pltpu.roll(o_sp, shift=H, axis=1)

        i_g = act[:, :H]            # offset-0 lane slices only
        f_g = f_al[:, :H]
        g_g = g_al[:, :H]
        o_g = o_al[:, :H]
        c = f_g * c + i_g * g_g
        h = o_g * jnp.tanh(c)

    r_out_ref[...] = r_sum
    c_out_ref[...] = c


# ----------------------------------------------------------------------------
# One-time parameter packing (hoisted out of the steady-state path).
# ----------------------------------------------------------------------------
def pack_process_params(wih, whh, bih, bhh, h_0, c_0, i0):
    """Packs torch.nn.LSTMCell-layout parameters for the kernel.

    Gates stay densely packed at their natural H-lane offsets along a 4*H
    (=128) lane axis; no zero padding of any dimension.
    """
    wih_t = jnp.asarray(wih, jnp.float32).T                      # (D, 4H)
    whh_t = jnp.asarray(whh, jnp.float32).T                      # (H, 4H)
    b = (jnp.asarray(bih, jnp.float32)
         + jnp.asarray(bhh, jnp.float32)).reshape(1, -1)         # (1, 4H)
    i0_r = jnp.asarray(i0, jnp.float32).reshape(1, -1)           # (1, D)
    h0_r = jnp.asarray(h_0, jnp.float32).reshape(1, -1)          # (1, H)
    c0_r = jnp.asarray(c_0, jnp.float32).reshape(1, -1)          # (1, H)
    return wih_t, whh_t, b, i0_r, h0_r, c0_r


# ----------------------------------------------------------------------------
# Steady-state wrapper: exactly one pallas_call, no pre/post XLA glue ops.
# ----------------------------------------------------------------------------
@functools.partial(jax.jit, static_argnums=(7,))
def process_forward(M, wih_t, whh_t, b, i0, h0, c0, lstm_steps):
    B, Hm, L = M.shape
    H = whh_t.shape[0]
    if lstm_steps < 1:                       # degenerate case; loop never runs
        return (jnp.broadcast_to(i0, (B, i0.shape[-1])),
                jnp.broadcast_to(c0, (B, H)))

    kernel = functools.partial(_process_kernel, lstm_steps=lstm_steps)
    vmem = pl.BlockSpec(memory_space=pltpu.MemorySpace.VMEM)

    # Grid-less single invocation: the whole problem (< 40 KiB resident) fits
    # one TensorCore and is invocation-latency bound.  A parallel batch grid
    # (dimension_semantics=("parallel",)) only pays off once B grows to real
    # sizes / needs both v7x TensorCores.
    r_t, c_t = pl.pallas_call(
        kernel,
        out_shape=(jax.ShapeDtypeStruct((B, Hm), jnp.float32),
                   jax.ShapeDtypeStruct((B, H), jnp.float32)),
        in_specs=[vmem] * 7,
        out_specs=(vmem, vmem),
    )(M, wih_t, whh_t, b, i0, h0, c0)
    return r_t, c_t


# ----------------------------------------------------------------------------
# Pure-JAX reference (mirrors the PyTorch forward literally)
# ----------------------------------------------------------------------------
def process_reference(M, wih, whh, bih, bhh, h_0, c_0, i0, lstm_steps):
    B, H, L = M.shape
    D = wih.shape[1]
    h = jnp.broadcast_to(h_0, (B, H))
    c = jnp.broadcast_to(c_0, (B, H))
    r = jnp.broadcast_to(i0, (B, D))
    for _ in range(lstm_steps):
        gates = r @ wih.T + bih + h @ whh.T + bhh
        i_g = jax.nn.sigmoid(gates[:, 0 * H:1 * H])
        f_g = jax.nn.sigmoid(gates[:, 1 * H:2 * H])
        g_g = jnp.tanh(gates[:, 2 * H:3 * H])
        o_g = jax.nn.sigmoid(gates[:, 3 * H:4 * H])
        c = f_g * c + i_g * g_g
        h = o_g * jnp.tanh(c)
        scores = jnp.matmul(jnp.swapaxes(M, -1, -2), c[:, :, None]) / math.sqrt(H)
        p_attn = jax.nn.softmax(scores, axis=-1)            # size-1 axis -> 1.0
        r = jnp.matmul(M, p_attn)[..., 0]
    return r, c


if __name__ == "__main__":
    # Small shapes consistent with the module: input_dim == hidden_dim (the
    # attention readout r_t is fed back as the LSTMCell input).
    batch_size, hidden_dim, set_length, lstm_steps = 2, 32, 8, 3
    input_dim = hidden_dim

    key = jax.random.PRNGKey(0)
    kM, kwih, kwhh, kbih, kbhh, kh0, kc0 = jax.random.split(key, 7)

    stdv = 1.0 / math.sqrt(hidden_dim)   # torch.nn.LSTMCell default init range
    M = jax.random.normal(kM, (batch_size, hidden_dim, set_length), jnp.float32)
    wih = jax.random.uniform(kwih, (4 * hidden_dim, input_dim), jnp.float32,
                             -stdv, stdv)
    whh = jax.random.uniform(kwhh, (4 * hidden_dim, hidden_dim), jnp.float32,
                             -stdv, stdv)
    bih = jax.random.uniform(kbih, (4 * hidden_dim,), jnp.float32, -stdv, stdv)
    bhh = jax.random.uniform(kbhh, (4 * hidden_dim,), jnp.float32, -stdv, stdv)
    h_0 = jax.random.normal(kh0, (hidden_dim,), jnp.float32)
    c_0 = jax.random.normal(kc0, (hidden_dim,), jnp.float32)
    i0 = jnp.zeros((input_dim,), jnp.float32)

    # One-time parameter packing (outside the per-call hot path).
    packed = pack_process_params(wih, whh, bih, bhh, h_0, c_0, i0)

    r_t, c_t = process_forward(M, *packed, lstm_steps)
    jax.block_until_ready((r_t, c_t))

    r_ref, c_ref = process_reference(M, wih, whh, bih, bhh, h_0, c_0, i0,
                                     lstm_steps)
    np.testing.assert_allclose(np.asarray(r_t), np.asarray(r_ref),
                               rtol=1e-4, atol=1e-4)
    np.testing.assert_allclose(np.asarray(c_t), np.asarray(c_ref),
                               rtol=1e-4, atol=1e-4)

    print("KERNEL_OK")
</pallas_src>

<mosaic_0001>
module attributes {stable_mosaic.version = 11 : i64} {
  func.func @_process_kernel(%arg0: memref<2x32x8xf32, #tpu.memory_space<vmem>>, %arg1: memref<32x128xf32, #tpu.memory_space<vmem>>, %arg2: memref<32x128xf32, #tpu.memory_space<vmem>>, %arg3: memref<1x128xf32, #tpu.memory_space<vmem>>, %arg4: memref<1x32xf32, #tpu.memory_space<vmem>>, %arg5: memref<1x32xf32, #tpu.memory_space<vmem>>, %arg6: memref<1x32xf32, #tpu.memory_space<vmem>>, %arg7: memref<2x32xf32, #tpu.memory_space<vmem>>, %arg8: memref<2x32xf32, #tpu.memory_space<vmem>>) attributes {dimension_semantics = [], scalar_prefetch = 0 : i64, scratch_operands = 0 : i64, tpu.core_type = #tpu.core_type<tc>} {
    %c0 = arith.constant 0 : index
    %c0_0 = arith.constant 0 : index
    %0 = vector.load %arg1[%c0, %c0_0] : memref<32x128xf32, #tpu.memory_space<vmem>>, vector<32x128xf32>
    %c0_1 = arith.constant 0 : index
    %c0_2 = arith.constant 0 : index
    %1 = vector.load %arg2[%c0_1, %c0_2] : memref<32x128xf32, #tpu.memory_space<vmem>>, vector<32x128xf32>
    %c0_3 = arith.constant 0 : index
    %c0_4 = arith.constant 0 : index
    %2 = vector.load %arg3[%c0_3, %c0_4] : memref<1x128xf32, #tpu.memory_space<vmem>>, vector<1x128xf32>
    %c0_5 = arith.constant 0 : index
    %c0_6 = arith.constant 0 : index
    %c0_7 = arith.constant 0 : index
    %3 = vector.load %arg0[%c0_5, %c0_6, %c0_7] : memref<2x32x8xf32, #tpu.memory_space<vmem>>, vector<2x32x8xf32>
    %cst = arith.constant dense<0.000000e+00> : vector<2x32xf32>
    %4 = vector.multi_reduction <add>, %3, %cst [2] : vector<2x32x8xf32> to vector<2x32xf32>
    %c0_8 = arith.constant 0 : index
    %c0_9 = arith.constant 0 : index
    %5 = vector.load %arg4[%c0_8, %c0_9] : memref<1x32xf32, #tpu.memory_space<vmem>>, vector<1x32xf32>
    %cst_10 = arith.constant dense<0.000000e+00> : vector<1x128xf32>
    %6 = tpu.matmul %5, %0, %cst_10 {dimension_numbers = #tpu.dot_dimension_numbers<[1], [0], [0], [1], [0, 0, 1, 1], [], []>} : vector<1x32xf32>, vector<32x128xf32>, vector<1x128xf32> -> vector<1x128xf32>
    %7 = arith.addf %6, %2 : vector<1x128xf32>
    %cst_11 = arith.constant dense<0.000000e+00> : vector<2x128xf32>
    %8 = tpu.matmul %4, %0, %cst_11 {dimension_numbers = #tpu.dot_dimension_numbers<[1], [0], [0], [1], [0, 0, 1, 1], [], []>} : vector<2x32xf32>, vector<32x128xf32>, vector<2x128xf32> -> vector<2x128xf32>
    %9 = vector.broadcast %2 : vector<1x128xf32> to vector<2x128xf32>
    %10 = arith.addf %8, %9 : vector<2x128xf32>
    %11 = tpu.iota {dimensions = array<i32: 1>} : vector<2x128xi32>
    %c64_i32 = arith.constant 64 : i32
    %12 = vector.broadcast %c64_i32 : i32 to vector<2x128xi32>
    %13 = arith.cmpi sge, %11, %12 : vector<2x128xi32>
    %c96_i32 = arith.constant 96 : i32
    %14 = vector.broadcast %c96_i32 : i32 to vector<2x128xi32>
    %15 = arith.cmpi slt, %11, %14 : vector<2x128xi32>
    %16 = arith.andi %13, %15 : vector<2x128xi1>
    %c32_i32 = arith.constant 32 : i32
    %17 = vector.broadcast %c32_i32 : i32 to vector<2x128xi32>
    %18 = arith.cmpi sge, %11, %17 : vector<2x128xi32>
    %c64_i32_12 = arith.constant 64 : i32
    %19 = vector.broadcast %c64_i32_12 : i32 to vector<2x128xi32>
    %20 = arith.cmpi slt, %11, %19 : vector<2x128xi32>
    %21 = arith.andi %18, %20 : vector<2x128xi1>
    %c96_i32_13 = arith.constant 96 : i32
    %22 = vector.broadcast %c96_i32_13 : i32 to vector<2x128xi32>
    %23 = arith.cmpi sge, %11, %22 : vector<2x128xi32>
    %c0_14 = arith.constant 0 : index
    %c0_15 = arith.constant 0 : index
    %24 = vector.load %arg5[%c0_14, %c0_15] : memref<1x32xf32, #tpu.memory_space<vmem>>, vector<1x32xf32>
    %25 = vector.shape_cast %24 : vector<1x32xf32> to vector<1x32xf32>
    %26 = vector.broadcast %25 : vector<1x32xf32> to vector<2x32xf32>
    %c0_16 = arith.constant 0 : index
    %c0_17 = arith.constant 0 : index
    %27 = vector.load %arg6[%c0_16, %c0_17] : memref<1x32xf32, #tpu.memory_space<vmem>>, vector<1x32xf32>
    %28 = vector.shape_cast %27 : vector<1x32xf32> to vector<1x32xf32>
    %29 = vector.broadcast %28 : vector<1x32xf32> to vector<2x32xf32>
    %cst_18 = arith.constant dense<0.000000e+00> : vector<2x128xf32>
    %30 = tpu.matmul %26, %1, %cst_18 {dimension_numbers = #tpu.dot_dimension_numbers<[1], [0], [0], [1], [0, 0, 1, 1], [], []>} : vector<2x32xf32>, vector<32x128xf32>, vector<2x128xf32> -> vector<2x128xf32>
    %31 = vector.broadcast %7 : vector<1x128xf32> to vector<2x128xf32>
    %32 = arith.addf %30, %31 : vector<2x128xf32>
    %33 = math.tanh %32 : vector<2x128xf32>
    %34 = arith.negf %32 : vector<2x128xf32>
    %35 = math.exp %34 : vector<2x128xf32>
    %cst_19 = arith.constant 1.000000e+00 : f32
    %36 = vector.broadcast %cst_19 : f32 to vector<2x128xf32>
    %37 = arith.addf %36, %35 : vector<2x128xf32>
    %38 = arith.divf %36, %37 : vector<2x128xf32>
    %39 = arith.select %16, %33, %38 : vector<2x128xi1>, vector<2x128xf32>
    %c64_i32_20 = arith.constant 64 : i32
    %40 = tpu.dynamic_rotate %39 by %c64_i32_20 dim 1 : vector<2x128xf32>, i32 -> vector<2x128xf32>
    %cst_21 = arith.constant 0.000000e+00 : f32
    %41 = vector.broadcast %cst_21 : f32 to vector<2x128xf32>
    %42 = arith.select %21, %39, %41 : vector<2x128xi1>, vector<2x128xf32>
    %c64_i32_22 = arith.constant 64 : i32
    %43 = tpu.dynamic_rotate %42 by %c64_i32_22 dim 1 : vector<2x128xf32>, i32 -> vector<2x128xf32>
    %44 = arith.addf %42, %43 : vector<2x128xf32>
    %c32_i32_23 = arith.constant 32 : i32
    %45 = tpu.dynamic_rotate %44 by %c32_i32_23 dim 1 : vector<2x128xf32>, i32 -> vector<2x128xf32>
    %cst_24 = arith.constant 0.000000e+00 : f32
    %46 = vector.broadcast %cst_24 : f32 to vector<2x128xf32>
    %47 = arith.select %23, %39, %46 : vector<2x128xi1>, vector<2x128xf32>
    %c64_i32_25 = arith.constant 64 : i32
    %48 = tpu.dynamic_rotate %47 by %c64_i32_25 dim 1 : vector<2x128xf32>, i32 -> vector<2x128xf32>
    %49 = arith.addf %47, %48 : vector<2x128xf32>
    %c32_i32_26 = arith.constant 32 : i32
    %50 = tpu.dynamic_rotate %49 by %c32_i32_26 dim 1 : vector<2x128xf32>, i32 -> vector<2x128xf32>
    %51 = vector.extract_strided_slice %39 {offsets = [0, 0], sizes = [2, 32], strides = [1, 1]} : vector<2x128xf32> to vector<2x32xf32>
    %52 = vector.extract_strided_slice %45 {offsets = [0, 0], sizes = [2, 32], strides = [1, 1]} : vector<2x128xf32> to vector<2x32xf32>
    %53 = vector.extract_strided_slice %40 {offsets = [0, 0], sizes = [2, 32], strides = [1, 1]} : vector<2x128xf32> to vector<2x32xf32>
    %54 = vector.extract_strided_slice %50 {offsets = [0, 0], sizes = [2, 32], strides = [1, 1]} : vector<2x128xf32> to vector<2x32xf32>
    %55 = arith.mulf %52, %29 : vector<2x32xf32>
    %56 = arith.mulf %51, %53 : vector<2x32xf32>
    %57 = arith.addf %55, %56 : vector<2x32xf32>
    %58 = math.tanh %57 : vector<2x32xf32>
    %59 = arith.mulf %54, %58 : vector<2x32xf32>
    %cst_27 = arith.constant dense<0.000000e+00> : vector<2x128xf32>
    %60 = tpu.matmul %59, %1, %cst_27 {dimension_numbers = #tpu.dot_dimension_numbers<[1], [0], [0], [1], [0, 0, 1, 1], [], []>} : vector<2x32xf32>, vector<32x128xf32>, vector<2x128xf32> -> vector<2x128xf32>
    %61 = arith.addf %60, %10 : vector<2x128xf32>
    %62 = math.tanh %61 : vector<2x128xf32>
    %63 = arith.negf %61 : vector<2x128xf32>
    %64 = math.exp %63 : vector<2x128xf32>
    %cst_28 = arith.constant 1.000000e+00 : f32
    %65 = vector.broadcast %cst_28 : f32 to vector<2x128xf32>
    %66 = arith.addf %65, %64 : vector<2x128xf32>
    %67 = arith.divf %65, %66 : vector<2x128xf32>
    %68 = arith.select %16, %62, %67 : vector<2x128xi1>, vector<2x128xf32>
    %c64_i32_29 = arith.constant 64 : i32
    %69 = tpu.dynamic_rotate %68 by %c64_i32_29 dim 1 : vector<2x128xf32>, i32 -> vector<2x128xf32>
    %cst_30 = arith.constant 0.000000e+00 : f32
    %70 = vector.broadcast %cst_30 : f32 to vector<2x128xf32>
    %71 = arith.select %21, %68, %70 : vector<2x128xi1>, vector<2x128xf32>
    %c64_i32_31 = arith.constant 64 : i32
    %72 = tpu.dynamic_rotate %71 by %c64_i32_31 dim 1 : vector<2x128xf32>, i32 -> vector<2x128xf32>
    %73 = arith.addf %71, %72 : vector<2x128xf32>
    %c32_i32_32 = arith.constant 32 : i32
    %74 = tpu.dynamic_rotate %73 by %c32_i32_32 dim 1 : vector<2x128xf32>, i32 -> vector<2x128xf32>
    %cst_33 = arith.constant 0.000000e+00 : f32
    %75 = vector.broadcast %cst_33 : f32 to vector<2x128xf32>
    %76 = arith.select %23, %68, %75 : vector<2x128xi1>, vector<2x128xf32>
    %c64_i32_34 = arith.constant 64 : i32
    %77 = tpu.dynamic_rotate %76 by %c64_i32_34 dim 1 : vector<2x128xf32>, i32 -> vector<2x128xf32>
    %78 = arith.addf %76, %77 : vector<2x128xf32>
    %c32_i32_35 = arith.constant 32 : i32
    %79 = tpu.dynamic_rotate %78 by %c32_i32_35 dim 1 : vector<2x128xf32>, i32 -> vector<2x128xf32>
    %80 = vector.extract_strided_slice %68 {offsets = [0, 0], sizes = [2, 32], strides = [1, 1]} : vector<2x128xf32> to vector<2x32xf32>
    %81 = vector.extract_strided_slice %74 {offsets = [0, 0], sizes = [2, 32], strides = [1, 1]} : vector<2x128xf32> to vector<2x32xf32>
    %82 = vector.extract_strided_slice %69 {offsets = [0, 0], sizes = [2, 32], strides = [1, 1]} : vector<2x128xf32> to vector<2x32xf32>
    %83 = vector.extract_strided_slice %79 {offsets = [0, 0], sizes = [2, 32], strides = [1, 1]} : vector<2x128xf32> to vector<2x32xf32>
    %84 = arith.mulf %81, %57 : vector<2x32xf32>
    %85 = arith.mulf %80, %82 : vector<2x32xf32>
    %86 = arith.addf %84, %85 : vector<2x32xf32>
    %87 = math.tanh %86 : vector<2x32xf32>
    %88 = arith.mulf %83, %87 : vector<2x32xf32>
    %cst_36 = arith.constant dense<0.000000e+00> : vector<2x128xf32>
    %89 = tpu.matmul %88, %1, %cst_36 {dimension_numbers = #tpu.dot_dimension_numbers<[1], [0], [0], [1], [0, 0, 1, 1], [], []>} : vector<2x32xf32>, vector<32x128xf32>, vector<2x128xf32> -> vector<2x128xf32>
    %90 = arith.addf %89, %10 : vector<2x128xf32>
    %91 = math.tanh %90 : vector<2x128xf32>
    %92 = arith.negf %90 : vector<2x128xf32>
    %93 = math.exp %92 : vector<2x128xf32>
    %cst_37 = arith.constant 1.000000e+00 : f32
    %94 = vector.broadcast %cst_37 : f32 to vector<2x128xf32>
    %95 = arith.addf %94, %93 : vector<2x128xf32>
    %96 = arith.divf %94, %95 : vector<2x128xf32>
    %97 = arith.select %16, %91, %96 : vector<2x128xi1>, vector<2x128xf32>
    %c64_i32_38 = arith.constant 64 : i32
    %98 = tpu.dynamic_rotate %97 by %c64_i32_38 dim 1 : vector<2x128xf32>, i32 -> vector<2x128xf32>
    %cst_39 = arith.constant 0.000000e+00 : f32
    %99 = vector.broadcast %cst_39 : f32 to vector<2x128xf32>
    %100 = arith.select %21, %97, %99 : vector<2x128xi1>, vector<2x128xf32>
    %c64_i32_40 = arith.constant 64 : i32
    %101 = tpu.dynamic_rotate %100 by %c64_i32_40 dim 1 : vector<2x128xf32>, i32 -> vector<2x128xf32>
    %102 = arith.addf %100, %101 : vector<2x128xf32>
    %c32_i32_41 = arith.constant 32 : i32
    %103 = tpu.dynamic_rotate %102 by %c32_i32_41 dim 1 : vector<2x128xf32>, i32 -> vector<2x128xf32>
    %104 = vector.extract_strided_slice %97 {offsets = [0, 0], sizes = [2, 32], strides = [1, 1]} : vector<2x128xf32> to vector<2x32xf32>
    %105 = vector.extract_strided_slice %103 {offsets = [0, 0], sizes = [2, 32], strides = [1, 1]} : vector<2x128xf32> to vector<2x32xf32>
    %106 = vector.extract_strided_slice %98 {offsets = [0, 0], sizes = [2, 32], strides = [1, 1]} : vector<2x128xf32> to vector<2x32xf32>
    %107 = arith.mulf %105, %86 : vector<2x32xf32>
    %108 = arith.mulf %104, %106 : vector<2x32xf32>
    %109 = arith.addf %107, %108 : vector<2x32xf32>
    %c0_42 = arith.constant 0 : index
    %c0_43 = arith.constant 0 : index
    %110 = vector.load %arg7[%c0_42, %c0_43] : memref<2x32xf32, #tpu.memory_space<vmem>>, vector<2x32xf32>
    tpu.vector_store %arg7[%c0_42, %c0_43], %4 {strides = array<i32>} : memref<2x32xf32, #tpu.memory_space<vmem>>, vector<2x32xf32>,
    %c0_44 = arith.constant 0 : index
    %c0_45 = arith.constant 0 : index
    %111 = vector.load %arg8[%c0_44, %c0_45] : memref<2x32xf32, #tpu.memory_space<vmem>>, vector<2x32xf32>
    tpu.vector_store %arg8[%c0_44, %c0_45], %109 {strides = array<i32>} : memref<2x32xf32, #tpu.memory_space<vmem>>, vector<2x32xf32>,
    return
  }
}

</mosaic_0001>

<llo_original>
// kernel: process_forward.1
$region0: #{process_forward.1}
  #allocation0 [shape = 'u32[]', space=smem, size = 0x4, offset = 0x4, fixed_abs, tag = 'smem constant byte address 0x4 - core index']
  #allocation1 [shape = 'u32[144,128]{1,0:T(1,128)}', space=vmem, size = 0x12000, scoped, tag = 'internal scratch']
  %s0 = inlined_call_operand.vmem [shape: f32[2,32,8], index: 0, kind: input, shape index: {}]
  %s1 = inlined_call_operand.vmem [shape: f32[32,128], index: 1, kind: input, shape index: {}]
  %s2 = inlined_call_operand.vmem [shape: f32[32,128], index: 2, kind: input, shape index: {}]
  %s3 = inlined_call_operand.vmem [shape: f32[1,128], index: 3, kind: input, shape index: {}]
  %s4 = inlined_call_operand.vmem [shape: f32[1,32], index: 4, kind: input, shape index: {}]
  %s5 = inlined_call_operand.vmem [shape: f32[1,32], index: 5, kind: input, shape index: {}]
  %s6 = inlined_call_operand.vmem [shape: f32[1,32], index: 6, kind: input, shape index: {}]
  %s7 = inlined_call_operand.hbm [shape: f32[2,32], index: 7, kind: output, shape index: {0}]
  %s8 = inlined_call_operand.hbm [shape: f32[2,32], index: 8, kind: output, shape index: {1}]
  %9 = xla_tuple %s7, %s8
  %s10 = sld [smem:[#allocation0]]
  $region46: #{process_forward.1} parent=0
    _
  %s12 = ssub.s32 1, %s10
  %s13 = scalar_select 0, %s12, %s10
  $region1: #{process_forward.1} parent=0
    #allocation2 [shape = 'u8[1024]{0}', space=vmem, size = 0x400, scoped, tag = 'output window, operand 0, single buffered']
    #allocation3 [shape = 's32[1]{0}', space=sflag, size = 0x4, scoped, tag = 'scoped memory for process_forward.1']
    #allocation4 [shape = 'u8[1024]{0}', space=vmem, size = 0x400, scoped, tag = 'output window, operand 1, single buffered']
    #allocation5 [shape = 's32[1]{0}', space=sflag, size = 0x4, scoped, tag = 'scoped memory for process_forward.1']
    %14 = vsyncpa [#allocation3], 0
    %15 = vsyncpa [#allocation5], 0
    // Predicated region
    $region2: #{process_forward.1} parent=1 // pred_check
      _
    $region3: #{process_forward.1} parent=1 // pred_check_branch
      %17 = sbr.rel (0) target = $region5
    $region4: #{process_forward.1} parent=1 // pred_region
      _
    $region5: #{process_forward.1} parent=1 // pred_fallthru
      _
    // Predicated region
    $region6: #{process_forward.1} parent=1 // pred_check
      _
    $region7: #{process_forward.1} parent=1 // pred_check_branch
      %19 = sbr.rel (0) target = $region9
    $region8: #{process_forward.1} parent=1 // pred_region
      _
    $region9: #{process_forward.1} parent=1 // pred_fallthru
      _
    // Predicated region
    $region10: #{process_forward.1} parent=1 // pred_check
      _
    $region11: #{process_forward.1} parent=1 // pred_check_branch
      %21 = sbr.rel (0) target = $region13
    $region12: #{process_forward.1} parent=1 // pred_region
      _
    $region13: #{process_forward.1} parent=1 // pred_fallthru
      _
    // Predicated region
    $region14: #{process_forward.1} parent=1 // pred_check
      _
    $region15: #{process_forward.1} parent=1 // pred_check_branch
      %23 = sbr.rel (0) target = $region17
    $region16: #{process_forward.1} parent=1 // pred_region
      _
    $region17: #{process_forward.1} parent=1 // pred_fallthru
      _
    // Predicated region
    $region18: #{process_forward.1} parent=1 // pred_check
      _
    $region19: #{process_forward.1} parent=1 // pred_check_branch
      %25 = sbr.rel (0) target = $region21
    $region20: #{process_forward.1} parent=1 // pred_region
      _
    $region21: #{process_forward.1} parent=1 // pred_fallthru
      _
    // Predicated region
    $region22: #{process_forward.1} parent=1 // pred_check
      _
    $region23: #{process_forward.1} parent=1 // pred_check_branch
      %27 = sbr.rel (0) target = $region25
    $region24: #{process_forward.1} parent=1 // pred_region
      _
    $region25: #{process_forward.1} parent=1 // pred_fallthru
      _
    // Predicated region
    $region26: #{process_forward.1} parent=1 // pred_check
      _
    $region27: #{process_forward.1} parent=1 // pred_check_branch
      %29 = sbr.rel (0) target = $region29
    $region28: #{process_forward.1} parent=1 // pred_region
      _
    $region29: #{process_forward.1} parent=1 // pred_fallthru
      _
    %v30 = vld [vmem:[%s1] sm:$0xff]
    %v31 = vld [vmem:[%s1 + $0x8] sm:$0xff]
    %v32 = vld [vmem:[%s1 + $0x10] sm:$0xff]
    %v33 = vld [vmem:[%s1 + $0x18] sm:$0xff]
    %v34 = vld [vmem:[%s2] sm:$0xff]
    %v35 = vld [vmem:[%s2 + $0x8] sm:$0xff]
    %v36 = vld [vmem:[%s2 + $0x10] sm:$0xff]
    %v37 = vld [vmem:[%s2 + $0x18] sm:$0xff]
    %v38 = vld [vmem:[%s3] sm:$0x1]
    %v39 = vld [vmem:[%s0] sm:$0xff]
    %v40 = vld [vmem:[%s0 + $0x8] sm:$0xff]
    %v41 = vld [vmem:[%s0 + $0x10] sm:$0xff]
    %v42 = vld [vmem:[%s0 + $0x18] sm:$0xff]
    %v43 = vld [vmem:[%s0 + $0x20] sm:$0xff]
    %v44 = vld [vmem:[%s0 + $0x28] sm:$0xff]
    %v45 = vld [vmem:[%s0 + $0x30] sm:$0xff]
    %v46 = vld [vmem:[%s0 + $0x38] sm:$0xff]
    %vm47 = vcmask 64512
    %v48 = vsel %vm47, %v39, 0.0
    %49 = vadd.xlane.f32.xlu0 %v48
    %v50 = vpop.xlane.xlu0 %49
    %v51 = vsel %vm47, %v40, 0.0
    %52 = vadd.xlane.f32.xlu0 %v51
    %v53 = vpop.xlane.xlu0 %52
    %v54 = vsel %vm47, %v41, 0.0
    %55 = vadd.xlane.f32.xlu0 %v54
    %v56 = vpop.xlane.xlu0 %55
    %v57 = vsel %vm47, %v42, 0.0
    %58 = vadd.xlane.f32.xlu0 %v57
    %v59 = vpop.xlane.xlu0 %58
    %v60 = vsel %vm47, %v43, 0.0
    %61 = vadd.xlane.f32.xlu0 %v60
    %v62 = vpop.xlane.xlu0 %61
    %v63 = vsel %vm47, %v44, 0.0
    %64 = vadd.xlane.f32.xlu0 %v63
    %v65 = vpop.xlane.xlu0 %64
    %v66 = vsel %vm47, %v45, 0.0
    %67 = vadd.xlane.f32.xlu0 %v66
    %v68 = vpop.xlane.xlu0 %67
    %v69 = vsel %vm47, %v46, 0.0
    %70 = vadd.xlane.f32.xlu0 %v69
    %v71 = vpop.xlane.xlu0 %70
    %v72 = vld [vmem:[%s4] sm:$0x1]
    %vm73 = vcmask 261120
    %v75 = vsel %vm73, %v72, 0
    %77 = vmatprep.subr.mxu0 0.0
    %78 = vmatpush1.msra.mxu0 0.0
    %79 = vmatprep.subr.mxu0 0.0
    %80 = vmatpush1.msra.mxu0 0.0
    %81 = vmatprep.subr.mxu0 0.0
    %82 = vmatpush1.msra.mxu0 0.0
    %83 = vmatprep.subr.mxu0 0.0
    %84 = vmatpush1.msra.mxu0 0.0
    %85 = vmatprep.subr.mxu0 0.0
    %86 = vmatpush1.msra.mxu0 0.0
    %87 = vmatprep.subr.mxu0 0.0
    %88 = vmatpush1.msra.mxu0 0.0
    %89 = vmatprep.subr.mxu0 0.0
    %90 = vmatpush1.msra.mxu0 0.0
    %91 = vmatprep.subr.mxu0 0.0
    %92 = vmatpush1.msra.mxu0 0.0
    %93 = vmatprep.subr.mxu0 0.0
    %94 = vmatpush1.msra.mxu0 0.0
    %95 = vmatprep.subr.mxu0 0.0
    %96 = vmatpush1.msra.mxu0 0.0
    %97 = vmatprep.subr.mxu0 0.0
    %98 = vmatpush1.msra.mxu0 0.0
    %99 = vmatprep.subr.mxu0 0.0
    %100 = vmatpush1.msra.mxu0 0.0
    %101 = vmatprep.subr.mxu0 0.0
    %102 = vmatpush1.msra.mxu0 %v33
    %103 = vmatprep.subr.mxu0 0.0
    %104 = vmatpush1.msra.mxu0 %v32
    %105 = vmatprep.subr.mxu0 0.0
    %106 = vmatpush1.msra.mxu0 %v31
    %107 = vmatprep.subr.mxu0 0.0
    %108 = vmatpush1.msra.mxu0 %v30
    %109 = vmatprep.subr.mxu0 0.0
    %110 = vmatpush2.msra.mxu0 0.0
    %111 = vmatprep.subr.mxu0 0.0
    %112 = vmatpush2.msra.mxu0 0.0
    %113 = vmatprep.subr.mxu0 0.0
    %114 = vmatpush2.msra.mxu0 0.0
    %115 = vmatprep.subr.mxu0 0.0
    %116 = vmatpush2.msra.mxu0 0.0
    %117 = vmatprep.subr.mxu0 0.0
    %118 = vmatpush2.msra.mxu0 0.0
    %119 = vmatprep.subr.mxu0 0.0
    %120 = vmatpush2.msra.mxu0 0.0
    %121 = vmatprep.subr.mxu0 0.0
    %122 = vmatpush2.msra.mxu0 0.0
    %123 = vmatprep.subr.mxu0 0.0
    %124 = vmatpush2.msra.mxu0 0.0
    %125 = vmatprep.subr.mxu0 0.0
    %126 = vmatpush2.msra.mxu0 0.0
    %127 = vmatprep.subr.mxu0 0.0
    %128 = vmatpush2.msra.mxu0 0.0
    %129 = vmatprep.subr.mxu0 0.0
    %130 = vmatpush2.msra.mxu0 0.0
    %131 = vmatprep.subr.mxu0 0.0
    %132 = vmatpush2.msra.mxu0 0.0
    %133 = vmatprep.subr.mxu0 0.0
    %134 = vmatpush2.msra.mxu0 0.0
    %135 = vmatprep.subr.mxu0 0.0
    %136 = vmatpush2.msra.mxu0 0.0
    %137 = vmatprep.subr.mxu0 0.0
    %138 = vmatpush2.msra.mxu0 0.0
    %139 = vmatprep.subr.mxu0 0.0
    %140 = vmatpush2.msra.mxu0 0.0
    %141 = vmatprep.mubr.f32.mxu0 0.0
    %142 = vmatmul.mubr.f32.gmra.mxu0 %v75
    %v143 = vpop.f32.mrf.mxu0
    %v144 = vadd.f32 %v38, %v143
    %v145 = vpop.f32.mrf.mxu0
    %146 = vdwg.mxu0
    %v148 = vlaneseq
    %v149 = vshrl.u32 %v148, 7
    %v150 = vsub.s32 0, %v149
    %v151 = vrot.slane %v38, %v150
    %v161 = vlaneseq
    %v162 = vand.u32 %v161, 127
    %v163 = vlaneseq
    %v164 = vshrl.u32 %v163, 7
    %v165 = vsub.s32 %v162, %v164
    %v166 = vrot.slane %v50, %v165
    %v167 = vadd.s32 %v162, 4294967288
    %v168 = vlaneseq
    %v169 = vshrl.u32 %v168, 7
    %v170 = vsub.s32 %v167, %v169
    %v171 = vrot.slane %v53, %v170
    %vm172 = vcmask 130112
    %v173 = vsel %vm172, %v171, %v166
    %v174 = vadd.s32 %v162, 4294967280
    %v175 = vlaneseq
    %v176 = vshrl.u32 %v175, 7
    %v177 = vsub.s32 %v174, %v176
    %v178 = vrot.slane %v56, %v177
    %vm179 = vcmask 195712
    %v180 = vsel %vm179, %v178, %v173
    %v181 = vadd.s32 %v162, 4294967272
    %v182 = vlaneseq
    %v183 = vshrl.u32 %v182, 7
    %v184 = vsub.s32 %v181, %v183
    %v185 = vrot.slane %v59, %v184
    %vm186 = vcmask 261312
    %v187 = vsel %vm186, %v185, %v180
    %v188 = vlaneseq
    %v189 = vshrl.u32 %v188, 7
    %v190 = vsub.s32 %v162, %v189
    %v191 = vrot.slane %v62, %v190
    %v192 = vlaneseq
    %v193 = vshrl.u32 %v192, 7
    %v194 = vsub.s32 %v167, %v193
    %v195 = vrot.slane %v65, %v194
    %v196 = vsel %vm172, %v195, %v191
    %v197 = vlaneseq
    %v198 = vshrl.u32 %v197, 7
    %v199 = vsub.s32 %v174, %v198
    %v200 = vrot.slane %v68, %v199
    %v201 = vsel %vm179, %v200, %v196
    %v202 = vlaneseq
    %v203 = vshrl.u32 %v202, 7
    %v204 = vsub.s32 %v181, %v203
    %v205 = vrot.slane %v71, %v204
    %v206 = vsel %vm186, %v205, %v201
    %vm207 = vcmask 1041409
    %v208 = vsel %vm207, %v206, %v187
    %v209 = vsel %vm73, %v208, 0
    %211 = vmatprep.subr.mxu0 0.0
    %212 = vmatpush1.msra.mxu0 0.0
    %213 = vmatprep.subr.mxu0 0.0
    %214 = vmatpush1.msra.mxu0 0.0
    %215 = vmatprep.subr.mxu0 0.0
    %216 = vmatpush1.msra.mxu0 0.0
    %217 = vmatprep.subr.mxu0 0.0
    %218 = vmatpush1.msra.mxu0 0.0
    %219 = vmatprep.subr.mxu0 0.0
    %220 = vmatpush1.msra.mxu0 0.0
    %221 = vmatprep.subr.mxu0 0.0
    %222 = vmatpush1.msra.mxu0 0.0
    %223 = vmatprep.subr.mxu0 0.0
    %224 = vmatpush1.msra.mxu0 0.0
    %225 = vmatprep.subr.mxu0 0.0
    %226 = vmatpush1.msra.mxu0 0.0
    %227 = vmatprep.subr.mxu0 0.0
    %228 = vmatpush1.msra.mxu0 0.0
    %229 = vmatprep.subr.mxu0 0.0
    %230 = vmatpush1.msra.mxu0 0.0
    %231 = vmatprep.subr.mxu0 0.0
    %232 = vmatpush1.msra.mxu0 0.0
    %233 = vmatprep.subr.mxu0 0.0
    %234 = vmatpush1.msra.mxu0 0.0
    %235 = vmatprep.subr.mxu0 0.0
    %236 = vmatpush1.msra.mxu0 %v33
    %237 = vmatprep.subr.mxu0 0.0
    %238 = vmatpush1.msra.mxu0 %v32
    %239 = vmatprep.subr.mxu0 0.0
    %240 = vmatpush1.msra.mxu0 %v31
    %241 = vmatprep.subr.mxu0 0.0
    %242 = vmatpush1.msra.mxu0 %v30
    %243 = vmatprep.subr.mxu0 0.0
    %244 = vmatpush2.msra.mxu0 0.0
    %245 = vmatprep.subr.mxu0 0.0
    %246 = vmatpush2.msra.mxu0 0.0
    %247 = vmatprep.subr.mxu0 0.0
    %248 = vmatpush2.msra.mxu0 0.0
    %249 = vmatprep.subr.mxu0 0.0
    %250 = vmatpush2.msra.mxu0 0.0
    %251 = vmatprep.subr.mxu0 0.0
    %252 = vmatpush2.msra.mxu0 0.0
    %253 = vmatprep.subr.mxu0 0.0
    %254 = vmatpush2.msra.mxu0 0.0
    %255 = vmatprep.subr.mxu0 0.0
    %256 = vmatpush2.msra.mxu0 0.0
    %257 = vmatprep.subr.mxu0 0.0
    %258 = vmatpush2.msra.mxu0 0.0
    %259 = vmatprep.subr.mxu0 0.0
    %260 = vmatpush2.msra.mxu0 0.0
    %261 = vmatprep.subr.mxu0 0.0
    %262 = vmatpush2.msra.mxu0 0.0
    %263 = vmatprep.subr.mxu0 0.0
    %264 = vmatpush2.msra.mxu0 0.0
    %265 = vmatprep.subr.mxu0 0.0
    %266 = vmatpush2.msra.mxu0 0.0
    %267 = vmatprep.subr.mxu0 0.0
    %268 = vmatpush2.msra.mxu0 0.0
    %269 = vmatprep.subr.mxu0 0.0
    %270 = vmatpush2.msra.mxu0 0.0
    %271 = vmatprep.subr.mxu0 0.0
    %272 = vmatpush2.msra.mxu0 0.0
    %273 = vmatprep.subr.mxu0 0.0
    %274 = vmatpush2.msra.mxu0 0.0
    %275 = vmatprep.mubr.f32.mxu0 0.0
    %276 = vmatmul.mubr.f32.gmra.mxu0 %v209
    %v277 = vpop.f32.mrf.mxu0
    %v278 = vadd.f32 %v151, %v277
    %v279 = vpop.f32.mrf.mxu0
    %280 = vdwg.mxu0
    %vm281 = vcmp.ge.s32.totalorder %v162, 64
    %vm282 = vcmp.lt.s32.totalorder %v162, 96
    %vm283 = vmand %vm281, %vm282
    %vm284 = vcmp.ge.s32.totalorder %v162, 32
    %vm285 = vcmp.lt.s32.totalorder %v162, 64
    %vm286 = vmand %vm284, %vm285
    %vm287 = vcmp.ge.s32.totalorder %v162, 96
    %v288 = vld [vmem:[%s5] sm:$0x1]
    %v290 = vlaneseq
    %v291 = vshrl.u32 %v290, 7
    %v292 = vsub.s32 0, %v291
    %v293 = vrot.slane %v288, %v292
    %v294 = vld [vmem:[%s6] sm:$0x1]
    %v296 = vlaneseq
    %v297 = vshrl.u32 %v296, 7
    %v298 = vsub.s32 0, %v297
    %v299 = vrot.slane %v294, %v298
    %v301 = vlaneseq
    %v302 = vshrl.u32 %v301, 7
    %v303 = vsub.s32 0, %v302
    %v304 = vrot.slane %v144, %v303
    %v305 = vsel %vm73, %v293, 0
    %307 = vmatprep.subr.mxu0 0.0
    %308 = vmatpush1.msra.mxu0 0.0
    %309 = vmatprep.subr.mxu0 0.0
    %310 = vmatpush1.msra.mxu0 0.0
    %311 = vmatprep.subr.mxu0 0.0
    %312 = vmatpush1.msra.mxu0 0.0
    %313 = vmatprep.subr.mxu0 0.0
    %314 = vmatpush1.msra.mxu0 0.0
    %315 = vmatprep.subr.mxu0 0.0
    %316 = vmatpush1.msra.mxu0 0.0
    %317 = vmatprep.subr.mxu0 0.0
    %318 = vmatpush1.msra.mxu0 0.0
    %319 = vmatprep.subr.mxu0 0.0
    %320 = vmatpush1.msra.mxu0 0.0
    %321 = vmatprep.subr.mxu0 0.0
    %322 = vmatpush1.msra.mxu0 0.0
    %323 = vmatprep.subr.mxu0 0.0
    %324 = vmatpush1.msra.mxu0 0.0
    %325 = vmatprep.subr.mxu0 0.0
    %326 = vmatpush1.msra.mxu0 0.0
    %327 = vmatprep.subr.mxu0 0.0
    %328 = vmatpush1.msra.mxu0 0.0
    %329 = vmatprep.subr.mxu0 0.0
    %330 = vmatpush1.msra.mxu0 0.0
    %331 = vmatprep.subr.mxu0 0.0
    %332 = vmatpush1.msra.mxu0 %v37
    %333 = vmatprep.subr.mxu0 0.0
    %334 = vmatpush1.msra.mxu0 %v36
    %335 = vmatprep.subr.mxu0 0.0
    %336 = vmatpush1.msra.mxu0 %v35
    %337 = vmatprep.subr.mxu0 0.0
    %338 = vmatpush1.msra.mxu0 %v34
    %339 = vmatprep.subr.mxu0 0.0
    %340 = vmatpush2.msra.mxu0 0.0
    %341 = vmatprep.subr.mxu0 0.0
    %342 = vmatpush2.msra.mxu0 0.0
    %343 = vmatprep.subr.mxu0 0.0
    %344 = vmatpush2.msra.mxu0 0.0
    %345 = vmatprep.subr.mxu0 0.0
    %346 = vmatpush2.msra.mxu0 0.0
    %347 = vmatprep.subr.mxu0 0.0
    %348 = vmatpush2.msra.mxu0 0.0
    %349 = vmatprep.subr.mxu0 0.0
    %350 = vmatpush2.msra.mxu0 0.0
    %351 = vmatprep.subr.mxu0 0.0
    %352 = vmatpush2.msra.mxu0 0.0
    %353 = vmatprep.subr.mxu0 0.0
    %354 = vmatpush2.msra.mxu0 0.0
    %355 = vmatprep.subr.mxu0 0.0
    %356 = vmatpush2.msra.mxu0 0.0
    %357 = vmatprep.subr.mxu0 0.0
    %358 = vmatpush2.msra.mxu0 0.0
    %359 = vmatprep.subr.mxu0 0.0
    %360 = vmatpush2.msra.mxu0 0.0
    %361 = vmatprep.subr.mxu0 0.0
    %362 = vmatpush2.msra.mxu0 0.0
    %363 = vmatprep.subr.mxu0 0.0
    %364 = vmatpush2.msra.mxu0 0.0
    %365 = vmatprep.subr.mxu0 0.0
    %366 = vmatpush2.msra.mxu0 0.0
    %367 = vmatprep.subr.mxu0 0.0
    %368 = vmatpush2.msra.mxu0 0.0
    %369 = vmatprep.subr.mxu0 0.0
    %370 = vmatpush2.msra.mxu0 0.0
    %371 = vmatprep.mubr.f32.mxu0 0.0
    %372 = vmatmul.mubr.f32.gmra.mxu0 %v305
    %v373 = vpop.f32.mrf.mxu0
    %v374 = vadd.f32 %v304, %v373
    %v375 = vpop.f32.mrf.mxu0
    %376 = vdwg.mxu0
    %v377 = vtanh.pop %v374
    %v378 = vxor.u32 %v374, 2147483648
    %v379 = vmul.f32 %v378, 1.442695
    %v380 = vpow.pop %v379
    %v381 = vadd.f32 %v380, 1.0
    %v382 = vrcp.pop %v381
    %v383 = vmul.f32 1.0, %v382
    %v384 = vsel %vm283, %v377, %v383
    %385 = vrot.lane.b32.xlu0 %v384, 64
    %v386 = vpop.permute.xlu0 %385
    %v387 = vsel %vm286, %v384, 0.0
    %388 = vrot.lane.b32.xlu0 %v387, 64
    %v389 = vpop.permute.xlu0 %388
    %v390 = vadd.f32 %v387, %v389
    %391 = vrot.lane.b32.xlu0 %v390, 32
    %v392 = vpop.permute.xlu0 %391
    %v393 = vsel %vm287, %v384, 0.0
    %394 = vrot.lane.b32.xlu0 %v393, 64
    %v395 = vpop.permute.xlu0 %394
    %v396 = vadd.f32 %v393, %v395
    %397 = vrot.lane.b32.xlu0 %v396, 32
    %v398 = vpop.permute.xlu0 %397
    %v399 = vmul.f32 %v392, %v299
    %v400 = vmul.f32 %v384, %v386
    %v401 = vadd.f32 %v399, %v400
    %v402 = vtanh.pop %v401
    %v403 = vmul.f32 %v398, %v402
    %v405 = vsel %vm73, %v403, 0
    %407 = vmatprep.subr.mxu0 0.0
    %408 = vmatpush1.msra.mxu0 0.0
    %409 = vmatprep.subr.mxu0 0.0
    %410 = vmatpush1.msra.mxu0 0.0
    %411 = vmatprep.subr.mxu0 0.0
    %412 = vmatpush1.msra.mxu0 0.0
    %413 = vmatprep.subr.mxu0 0.0
    %414 = vmatpush1.msra.mxu0 0.0
    %415 = vmatprep.subr.mxu0 0.0
    %416 = vmatpush1.msra.mxu0 0.0
    %417 = vmatprep.subr.mxu0 0.0
    %418 = vmatpush1.msra.mxu0 0.0
    %419 = vmatprep.subr.mxu0 0.0
    %420 = vmatpush1.msra.mxu0 0.0
    %421 = vmatprep.subr.mxu0 0.0
    %422 = vmatpush1.msra.mxu0 0.0
    %423 = vmatprep.subr.mxu0 0.0
    %424 = vmatpush1.msra.mxu0 0.0
    %425 = vmatprep.subr.mxu0 0.0
    %426 = vmatpush1.msra.mxu0 0.0
    %427 = vmatprep.subr.mxu0 0.0
    %428 = vmatpush1.msra.mxu0 0.0
    %429 = vmatprep.subr.mxu0 0.0
    %430 = vmatpush1.msra.mxu0 0.0
    %431 = vmatprep.subr.mxu0 0.0
    %432 = vmatpush1.msra.mxu0 %v37
    %433 = vmatprep.subr.mxu0 0.0
    %434 = vmatpush1.msra.mxu0 %v36
    %435 = vmatprep.subr.mxu0 0.0
    %436 = vmatpush1.msra.mxu0 %v35
    %437 = vmatprep.subr.mxu0 0.0
    %438 = vmatpush1.msra.mxu0 %v34
    %439 = vmatprep.subr.mxu0 0.0
    %440 = vmatpush2.msra.mxu0 0.0
    %441 = vmatprep.subr.mxu0 0.0
    %442 = vmatpush2.msra.mxu0 0.0
    %443 = vmatprep.subr.mxu0 0.0
    %444 = vmatpush2.msra.mxu0 0.0
    %445 = vmatprep.subr.mxu0 0.0
    %446 = vmatpush2.msra.mxu0 0.0
    %447 = vmatprep.subr.mxu0 0.0
    %448 = vmatpush2.msra.mxu0 0.0
    %449 = vmatprep.subr.mxu0 0.0
    %450 = vmatpush2.msra.mxu0 0.0
    %451 = vmatprep.subr.mxu0 0.0
    %452 = vmatpush2.msra.mxu0 0.0
    %453 = vmatprep.subr.mxu0 0.0
    %454 = vmatpush2.msra.mxu0 0.0
    %455 = vmatprep.subr.mxu0 0.0
    %456 = vmatpush2.msra.mxu0 0.0
    %457 = vmatprep.subr.mxu0 0.0
    %458 = vmatpush2.msra.mxu0 0.0
    %459 = vmatprep.subr.mxu0 0.0
    %460 = vmatpush2.msra.mxu0 0.0
    %461 = vmatprep.subr.mxu0 0.0
    %462 = vmatpush2.msra.mxu0 0.0
    %463 = vmatprep.subr.mxu0 0.0
    %464 = vmatpush2.msra.mxu0 0.0
    %465 = vmatprep.subr.mxu0 0.0
    %466 = vmatpush2.msra.mxu0 0.0
    %467 = vmatprep.subr.mxu0 0.0
    %468 = vmatpush2.msra.mxu0 0.0
    %469 = vmatprep.subr.mxu0 0.0
    %470 = vmatpush2.msra.mxu0 0.0
    %471 = vmatprep.mubr.f32.mxu0 0.0
    %472 = vmatmul.mubr.f32.gmra.mxu0 %v405
    %v473 = vpop.f32.mrf.mxu0
    %v474 = vadd.f32 %v278, %v473
    %v475 = vpop.f32.mrf.mxu0
    %476 = vdwg.mxu0
    %v477 = vtanh.pop %v474
    %v478 = vxor.u32 %v474, 2147483648
    %v479 = vmul.f32 %v478, 1.442695
    %v480 = vpow.pop %v479
    %v481 = vadd.f32 %v480, 1.0
    %v482 = vrcp.pop %v481
    %v483 = vmul.f32 1.0, %v482
    %v484 = vsel %vm283, %v477, %v483
    %485 = vrot.lane.b32.xlu0 %v484, 64
    %v486 = vpop.permute.xlu0 %485
    %v487 = vsel %vm286, %v484, 0.0
    %488 = vrot.lane.b32.xlu0 %v487, 64
    %v489 = vpop.permute.xlu0 %488
    %v490 = vadd.f32 %v487, %v489
    %491 = vrot.lane.b32.xlu0 %v490, 32
    %v492 = vpop.permute.xlu0 %491
    %v493 = vsel %vm287, %v484, 0.0
    %494 = vrot.lane.b32.xlu0 %v493, 64
    %v495 = vpop.permute.xlu0 %494
    %v496 = vadd.f32 %v493, %v495
    %497 = vrot.lane.b32.xlu0 %v496, 32
    %v498 = vpop.permute.xlu0 %497
    %v499 = vmul.f32 %v492, %v401
    %v500 = vmul.f32 %v484, %v486
    %v501 = vadd.f32 %v499, %v500
    %v502 = vtanh.pop %v501
    %v503 = vmul.f32 %v498, %v502
    %v505 = vsel %vm73, %v503, 0
    %507 = vmatprep.subr.mxu0 0.0
    %508 = vmatpush1.msra.mxu0 0.0
    %509 = vmatprep.subr.mxu0 0.0
    %510 = vmatpush1.msra.mxu0 0.0
    %511 = vmatprep.subr.mxu0 0.0
    %512 = vmatpush1.msra.mxu0 0.0
    %513 = vmatprep.subr.mxu0 0.0
    %514 = vmatpush1.msra.mxu0 0.0
    %515 = vmatprep.subr.mxu0 0.0
    %516 = vmatpush1.msra.mxu0 0.0
    %517 = vmatprep.subr.mxu0 0.0
    %518 = vmatpush1.msra.mxu0 0.0
    %519 = vmatprep.subr.mxu0 0.0
    %520 = vmatpush1.msra.mxu0 0.0
    %521 = vmatprep.subr.mxu0 0.0
    %522 = vmatpush1.msra.mxu0 0.0
    %523 = vmatprep.subr.mxu0 0.0
    %524 = vmatpush1.msra.mxu0 0.0
    %525 = vmatprep.subr.mxu0 0.0
    %526 = vmatpush1.msra.mxu0 0.0
    %527 = vmatprep.subr.mxu0 0.0
    %528 = vmatpush1.msra.mxu0 0.0
    %529 = vmatprep.subr.mxu0 0.0
    %530 = vmatpush1.msra.mxu0 0.0
    %531 = vmatprep.subr.mxu0 0.0
    %532 = vmatpush1.msra.mxu0 %v37
    %533 = vmatprep.subr.mxu0 0.0
    %534 = vmatpush1.msra.mxu0 %v36
    %535 = vmatprep.subr.mxu0 0.0
    %536 = vmatpush1.msra.mxu0 %v35
    %537 = vmatprep.subr.mxu0 0.0
    %538 = vmatpush1.msra.mxu0 %v34
    %539 = vmatprep.subr.mxu0 0.0
    %540 = vmatpush2.msra.mxu0 0.0
    %541 = vmatprep.subr.mxu0 0.0
    %542 = vmatpush2.msra.mxu0 0.0
    %543 = vmatprep.subr.mxu0 0.0
    %544 = vmatpush2.msra.mxu0 0.0
    %545 = vmatprep.subr.mxu0 0.0
    %546 = vmatpush2.msra.mxu0 0.0
    %547 = vmatprep.subr.mxu0 0.0
    %548 = vmatpush2.msra.mxu0 0.0
    %549 = vmatprep.subr.mxu0 0.0
    %550 = vmatpush2.msra.mxu0 0.0
    %551 = vmatprep.subr.mxu0 0.0
    %552 = vmatpush2.msra.mxu0 0.0
    %553 = vmatprep.subr.mxu0 0.0
    %554 = vmatpush2.msra.mxu0 0.0
    %555 = vmatprep.subr.mxu0 0.0
    %556 = vmatpush2.msra.mxu0 0.0
    %557 = vmatprep.subr.mxu0 0.0
    %558 = vmatpush2.msra.mxu0 0.0
    %559 = vmatprep.subr.mxu0 0.0
    %560 = vmatpush2.msra.mxu0 0.0
    %561 = vmatprep.subr.mxu0 0.0
    %562 = vmatpush2.msra.mxu0 0.0
    %563 = vmatprep.subr.mxu0 0.0
    %564 = vmatpush2.msra.mxu0 0.0
    %565 = vmatprep.subr.mxu0 0.0
    %566 = vmatpush2.msra.mxu0 0.0
    %567 = vmatprep.subr.mxu0 0.0
    %568 = vmatpush2.msra.mxu0 0.0
    %569 = vmatprep.subr.mxu0 0.0
    %570 = vmatpush2.msra.mxu0 0.0
    %571 = vmatprep.mubr.f32.mxu0 0.0
    %572 = vmatmul.mubr.f32.gmra.mxu0 %v505
    %v573 = vpop.f32.mrf.mxu0
    %v574 = vadd.f32 %v278, %v573
    %v575 = vpop.f32.mrf.mxu0
    %576 = vdwg.mxu0
    %v577 = vtanh.pop %v574
    %v578 = vxor.u32 %v574, 2147483648
    %v579 = vmul.f32 %v578, 1.442695
    %v580 = vpow.pop %v579
    %v581 = vadd.f32 %v580, 1.0
    %v582 = vrcp.pop %v581
    %v583 = vmul.f32 1.0, %v582
    %v584 = vsel %vm283, %v577, %v583
    %585 = vrot.lane.b32.xlu0 %v584, 64
    %v586 = vpop.permute.xlu0 %585
    %v587 = vsel %vm286, %v584, 0.0
    %588 = vrot.lane.b32.xlu0 %v587, 64
    %v589 = vpop.permute.xlu0 %588
    %v590 = vadd.f32 %v587, %v589
    %591 = vrot.lane.b32.xlu0 %v590, 32
    %v592 = vpop.permute.xlu0 %591
    %v593 = vmul.f32 %v592, %v501
    %v594 = vmul.f32 %v584, %v586
    %v595 = vadd.f32 %v593, %v594
    %vm597 = vcmask 254976
    %598 = vst.msk [vmem:[#allocation2] sm:$0x3] %vm597, %v208
    %599 = vst.msk [vmem:[#allocation4] sm:$0x3] %vm597, %v595
    // Predicated region
    $region30: #{process_forward.1} parent=1 // pred_check
      _
    $region31: #{process_forward.1} parent=1 // pred_check_branch
      %601 = sbr.rel (0) target = $region33
    $region32: #{process_forward.1} parent=1 // pred_region
      %s603 = ssub.s32 32, 32
      %604 = vsyncadd [#allocation3], %s603
      %s606 = sshll.u32 [#allocation2], 4
      %s607 = int_to_ptr.vmem [resolvable:$true] %s606
      %609 = dma.vmem_to_hbm [thread:$0]  %s607, 32, %s7, [#allocation3]
    $region33: #{process_forward.1} parent=1 // pred_fallthru
      _
    // Predicated region
    $region34: #{process_forward.1} parent=1 // pred_check
      _
    $region35: #{process_forward.1} parent=1 // pred_check_branch
      %611 = sbr.rel (0) target = $region37
    $region36: #{process_forward.1} parent=1 // pred_region
      %s613 = ssub.s32 32, 32
      %614 = vsyncadd [#allocation5], %s613
      %s616 = sshll.u32 [#allocation4], 4
      %s617 = int_to_ptr.vmem [resolvable:$true] %s616
      %619 = dma.vmem_to_hbm [thread:$0]  %s617, 32, %s8, [#allocation5]
    $region37: #{process_forward.1} parent=1 // pred_fallthru
      _
    // Predicated region
    $region38: #{process_forward.1} parent=1 // pred_check
      _
    $region39: #{process_forward.1} parent=1 // pred_check_branch
      %621 = sbr.rel (0) target = $region41
    $region40: #{process_forward.1} parent=1 // pred_region
      %622 = dma.done [#allocation3], 32
    $region41: #{process_forward.1} parent=1 // pred_fallthru
      _
    // Predicated region
    $region42: #{process_forward.1} parent=1 // pred_check
      _
    $region43: #{process_forward.1} parent=1 // pred_check_branch
      %624 = sbr.rel (0) target = $region45
    $region44: #{process_forward.1} parent=1 // pred_region
      %625 = dma.done [#allocation5], 32
    $region45: #{process_forward.1} parent=1 // pred_fallthru
      _
    %626 = vsyncpa [#allocation3], 1
    %627 = vsyncpa [#allocation5], 1

</llo_original>
